<compile_context>
chip_gen: v7x
topology: tpu7x:2x2x1
jax: 0.10.0
libtpu: 0.0.40
codegen_flags: <defaults>
</compile_context>

<pallas_src>
import math

import numpy as np
import jax
import jax.numpy as jnp
from jax.experimental import pallas as pl
from jax.experimental.pallas import tpu as pltpu

_LANES = 128
_TARGET_BLOCK_BYTES = 4 * 1024 * 1024   # per VMEM block buffer (double-buffered)
_VMEM_LIMIT_BYTES = 32 * 1024 * 1024    # raises v5e's 16 MiB default; safe on all gens


def _affine_kernel(scale_ref, bias_ref, x_ref, o_ref):
    # Deliberately just one f32 multiply-add per element: HBM DMA is the
    # binding resource on every generation, so body micro-opts are pure risk.
    x = x_ref[...].astype(jnp.float32)
    o_ref[...] = (x * scale_ref[...] + bias_ref[...]).astype(o_ref.dtype)


def _round_up(v, m):
    return -(-v // m) * m


def _pick_tile(extent, max_tile, align):
    """Tile size along the single tiled grid axis.

    Returns a multiple of `align` (or the full extent), capped at `max_tile`,
    and forces >= 2 grid steps whenever the extent allows it so the "parallel"
    axis can shard across v7x's two TensorCores.
    """
    max_tile = max(align, (max_tile // align) * align)
    if extent > max_tile:
        return max_tile
    if extent >= 2 * align:
        return min(extent, _round_up(-(-extent // 2), align))
    return extent


def _launch(x_view, scale_b, bias_b, block_shape, tiled_axis, out_dtype, donate):
    """Single pallas_call over a 1-D grid along `tiled_axis` of x_view."""
    grid = (pl.cdiv(x_view.shape[tiled_axis], block_shape[tiled_axis]),)

    def x_map(t):
        idx = [0] * x_view.ndim
        idx[tiled_axis] = t
        return tuple(idx)

    def sb_map(t):
        return (0,) * scale_b.ndim

    total = math.prod(x_view.shape)
    bytes_accessed = total * (x_view.dtype.itemsize + np.dtype(out_dtype).itemsize)
    cost = pl.CostEstimate(flops=2 * total, transcendentals=0,
                           bytes_accessed=bytes_accessed)

    kwargs = {}
    if donate and np.dtype(out_dtype) == x_view.dtype:
        # args are (scale, bias, x) -> alias x (index 2) to output 0.
        kwargs["input_output_aliases"] = {2: 0}

    return pl.pallas_call(
        _affine_kernel,
        out_shape=jax.ShapeDtypeStruct(x_view.shape, out_dtype),
        grid=grid,
        in_specs=[
            pl.BlockSpec(scale_b.shape, sb_map),   # tiny f32 VMEM, resident
            pl.BlockSpec(bias_b.shape, sb_map),    # tiny f32 VMEM, resident
            pl.BlockSpec(block_shape, x_map),
        ],
        out_specs=pl.BlockSpec(block_shape, x_map),
        compiler_params=pltpu.CompilerParams(
            dimension_semantics=("parallel",),
            vmem_limit_bytes=_VMEM_LIMIT_BYTES),
        cost_estimate=cost,
        **kwargs,
    )(scale_b, bias_b, x_view)


def min_max_norm(x, min_vals, max_vals, *, donate=False):
    """Pallas implementation of MinMaxNorm.forward.

    x: (C, ...) array (channel-first, like the PyTorch module).
    min_vals / max_vals: float/int (scalar branch) or tuple (C==2 branch).
    donate: if True and dtypes match, alias x's HBM buffer as the output.
    """
    C = x.shape[0]
    n = math.prod(x.shape[1:]) if x.ndim > 1 else 1
    out_dtype = x.dtype if jnp.issubdtype(x.dtype, jnp.floating) else jnp.float32
    itemsize = x.dtype.itemsize
    align = max(8, 32 // itemsize)              # sublane multiple: f32->8, bf16->16, int8->32
    # Lane tile for the ragged (sublane-padded) layouts: size by padded VMEM
    # footprint (~32 B per lane column regardless of dtype).
    max_tn = max(_LANES, (_TARGET_BLOCK_BYTES // 32) // _LANES * _LANES)

    if C == 2:
        # Per-channel branch: uses min[0]/max[0] and min[1]/max[1].
        mn = jnp.asarray(min_vals, jnp.float32).reshape(-1)
        mx = jnp.asarray(max_vals, jnp.float32).reshape(-1)
        assert mn.shape[0] >= 2 and mx.shape[0] >= 2, (
            "shape[0] == 2 path requires tuple min/max with >= 2 entries")
        mn, mx = mn[:2], mx[:2]
        scale = 1.0 / (mx - mn)                  # (2,) f32; max==min -> inf like ref
        bias = -mn * scale

        if n > 0 and n % _LANES == 0:
            # Lane-dense layout: (2, rows, 128), both channels per grid step.
            rows = n // _LANES
            x_view = x.reshape(2, rows, _LANES)
            max_rows = max(align, _TARGET_BLOCK_BYTES // (2 * _LANES * itemsize))
            tile_rows = _pick_tile(rows, max_rows, align)
            out = _launch(x_view, scale.reshape(2, 1, 1), bias.reshape(2, 1, 1),
                          (2, tile_rows, _LANES), 1, out_dtype, donate)
        else:
            # Ragged spatial size: (2, n) view, 128-multiple lane tiles with a
            # masked final block (no pad / slice passes over HBM).
            x_view = x.reshape(2, n)
            tn = _pick_tile(n, max_tn, _LANES)
            out = _launch(x_view, scale.reshape(2, 1), bias.reshape(2, 1),
                          (2, tn), 1, out_dtype, donate)
    else:
        if isinstance(min_vals, (int, float)) and isinstance(max_vals, (int, float)):
            mn = jnp.asarray(min_vals, jnp.float32)
            mx = jnp.asarray(max_vals, jnp.float32)
        else:
            # TODO(synk): tuple min/max with shape[0] != 2 (broadcast along the
            # LAST dim in the PyTorch else-branch) is not implemented.
            raise NotImplementedError(
                "tuple min/max with shape[0] != 2 is not implemented")
        scale = 1.0 / (mx - mn)
        bias = -mn * scale

        total = C * n
        if total > 0 and total % _LANES == 0:
            # Whole tensor flattened to a lane-dense (rows, 128) slab.
            rows = total // _LANES
            x_view = x.reshape(rows, _LANES)
            max_rows = max(align, _TARGET_BLOCK_BYTES // (_LANES * itemsize))
            tile_rows = _pick_tile(rows, max_rows, align)
            out = _launch(x_view, scale.reshape(1, 1), bias.reshape(1, 1),
                          (tile_rows, _LANES), 0, out_dtype, donate)
        else:
            # Ragged total: (1, total) view, masked final lane tile.
            x_view = x.reshape(1, total)
            tn = _pick_tile(total, max_tn, _LANES)
            out = _launch(x_view, scale.reshape(1, 1), bias.reshape(1, 1),
                          (1, tn), 1, out_dtype, donate)

    return out.reshape(x.shape)


if __name__ == "__main__":
    key = jax.random.PRNGKey(0)
    k1, k2, k3, k4, k5 = jax.random.split(key, 5)

    # --- case 1: shape[0] == 2, tuple min/max (per-channel, lane-dense) ---
    min_t = (-1.0, 0.0)
    max_t = (1.0, 10.0)
    x2 = jax.random.uniform(k1, (2, 16, 16), dtype=jnp.float32,
                            minval=-1.0, maxval=10.0)
    out2 = jax.block_until_ready(min_max_norm(x2, min_t, max_t))
    ref2 = jnp.stack([(x2[0] - min_t[0]) / (max_t[0] - min_t[0]),
                      (x2[1] - min_t[1]) / (max_t[1] - min_t[1])], axis=0)
    assert jnp.allclose(out2, ref2, rtol=1e-5, atol=1e-6), "per-channel dense mismatch"

    # --- case 2: shape[0] != 2, scalar (int) min/max (flattened, lane-dense) ---
    x4 = jax.random.uniform(k2, (4, 16, 16), dtype=jnp.float32,
                            minval=0.0, maxval=5.0)
    out4 = jax.block_until_ready(min_max_norm(x4, 0, 5))     # ints accepted
    ref4 = (x4 - 0.0) / (5.0 - 0.0)
    assert jnp.allclose(out4, ref4, rtol=1e-5, atol=1e-6), "scalar dense mismatch"

    # --- case 3: scalar branch, element count not a multiple of 128 (ragged) ---
    x7 = jax.random.uniform(k3, (4, 7, 9), dtype=jnp.float32,
                            minval=-2.0, maxval=3.0)
    out7 = jax.block_until_ready(min_max_norm(x7, -2.0, 3.0))
    ref7 = (x7 - (-2.0)) / (3.0 - (-2.0))
    assert jnp.allclose(out7, ref7, rtol=1e-5, atol=1e-6), "scalar ragged mismatch"

    # --- case 4: per-channel branch, ragged spatial size ---
    x2r = jax.random.uniform(k4, (2, 7, 9), dtype=jnp.float32,
                             minval=-1.0, maxval=10.0)
    out2r = jax.block_until_ready(min_max_norm(x2r, min_t, max_t))
    ref2r = jnp.stack([(x2r[0] - min_t[0]) / (max_t[0] - min_t[0]),
                       (x2r[1] - min_t[1]) / (max_t[1] - min_t[1])], axis=0)
    assert jnp.allclose(out2r, ref2r, rtol=1e-5, atol=1e-6), "per-channel ragged mismatch"

    # --- case 5: per-channel dense with a multi-step grid + ragged last tile ---
    x2m = jax.random.uniform(k5, (2, 33, 128), dtype=jnp.float32,
                             minval=-1.0, maxval=10.0)
    out2m = jax.block_until_ready(min_max_norm(x2m, min_t, max_t))
    ref2m = jnp.stack([(x2m[0] - min_t[0]) / (max_t[0] - min_t[0]),
                       (x2m[1] - min_t[1]) / (max_t[1] - min_t[1])], axis=0)
    assert jnp.allclose(out2m, ref2m, rtol=1e-5, atol=1e-6), "multi-step grid mismatch"

    print("KERNEL_OK")
</pallas_src>

<mosaic_0001>
module attributes {stable_mosaic.version = 11 : i64} {
  func.func @_affine_kernel(%arg0: i32, %arg1: memref<2x1x1xf32, #tpu.memory_space<vmem>>, %arg2: memref<2x1x1xf32, #tpu.memory_space<vmem>>, %arg3: memref<2x2x128xf32, #tpu.memory_space<vmem>>, %arg4: memref<2x2x128xf32, #tpu.memory_space<vmem>>) attributes {dimension_semantics = [#tpu.dimension_semantics<parallel>], iteration_bounds = array<i64: 1>, scalar_prefetch = 0 : i64, scratch_operands = 0 : i64, tpu.core_type = #tpu.core_type<tc>, window_params = [{pipeline_mode = #tpu.pipeline_mode<synchronous>, transform_indices = @transform_0, window_bounds = array<i64: 2, 1, 1>}, {pipeline_mode = #tpu.pipeline_mode<synchronous>, transform_indices = @transform_1, window_bounds = array<i64: 2, 1, 1>}, {transform_indices = @transform_2, window_bounds = array<i64: 2, 2, 128>}, {transform_indices = @transform_3, window_bounds = array<i64: 2, 2, 128>}]} {
    %c0 = arith.constant 0 : index
    %c0_0 = arith.constant 0 : index
    %c0_1 = arith.constant 0 : index
    %0 = vector.load %arg3[%c0, %c0_0, %c0_1] : memref<2x2x128xf32, #tpu.memory_space<vmem>>, vector<2x2x128xf32>
    %c0_2 = arith.constant 0 : index
    %c0_3 = arith.constant 0 : index
    %c0_4 = arith.constant 0 : index
    %1 = vector.load %arg1[%c0_2, %c0_3, %c0_4] : memref<2x1x1xf32, #tpu.memory_space<vmem>>, vector<2x1x1xf32>
    %2 = vector.broadcast %1 : vector<2x1x1xf32> to vector<2x2x128xf32>
    %3 = arith.mulf %0, %2 : vector<2x2x128xf32>
    %c0_5 = arith.constant 0 : index
    %c0_6 = arith.constant 0 : index
    %c0_7 = arith.constant 0 : index
    %4 = vector.load %arg2[%c0_5, %c0_6, %c0_7] : memref<2x1x1xf32, #tpu.memory_space<vmem>>, vector<2x1x1xf32>
    %5 = vector.broadcast %4 : vector<2x1x1xf32> to vector<2x2x128xf32>
    %6 = arith.addf %3, %5 : vector<2x2x128xf32>
    %c0_8 = arith.constant 0 : index
    %c0_9 = arith.constant 0 : index
    %c0_10 = arith.constant 0 : index
    %7 = vector.load %arg4[%c0_8, %c0_9, %c0_10] : memref<2x2x128xf32, #tpu.memory_space<vmem>>, vector<2x2x128xf32>
    tpu.vector_store %arg4[%c0_8, %c0_9, %c0_10], %6 {strides = array<i32>} : memref<2x2x128xf32, #tpu.memory_space<vmem>>, vector<2x2x128xf32>,
    return
  }
  func.func @transform_0(%arg0: i32) -> (i32, i32, i32) {
    %c0_i32 = arith.constant 0 : i32
    %c0_i32_0 = arith.constant 0 : i32
    %c0_i32_1 = arith.constant 0 : i32
    %c0_i32_2 = arith.constant 0 : i32
    return %c0_i32, %c0_i32_0, %c0_i32_1 : i32, i32, i32
  }
  func.func @transform_1(%arg0: i32) -> (i32, i32, i32) {
    %c0_i32 = arith.constant 0 : i32
    %c0_i32_0 = arith.constant 0 : i32
    %c0_i32_1 = arith.constant 0 : i32
    %c0_i32_2 = arith.constant 0 : i32
    return %c0_i32, %c0_i32_0, %c0_i32_1 : i32, i32, i32
  }
  func.func @transform_2(%arg0: i32) -> (i32, i32, i32) {
    %c0_i32 = arith.constant 0 : i32
    %c0_i32_0 = arith.constant 0 : i32
    %c0_i32_1 = arith.constant 0 : i32
    return %c0_i32, %arg0, %c0_i32_0 : i32, i32, i32
  }
  func.func @transform_3(%arg0: i32) -> (i32, i32, i32) {
    %c0_i32 = arith.constant 0 : i32
    %c0_i32_0 = arith.constant 0 : i32
    %c0_i32_1 = arith.constant 0 : i32
    return %c0_i32, %arg0, %c0_i32_0 : i32, i32, i32
  }
}

</mosaic_0001>

<llo_original>
// kernel: tpu_custom_call.1
$region0: #{tpu_custom_call.1}
  #allocation0 [shape = 'u32[]', space=smem, size = 0x4, offset = 0x4, fixed_abs, tag = 'smem constant byte address 0x4 - core index']
  #allocation1 [shape = 'u32[144,128]{1,0:T(1,128)}', space=vmem, size = 0x12000, scoped, tag = 'internal scratch']
  %s0 = inlined_call_operand.vmem [shape: f32[2,1,1], index: 0, kind: input, shape index: {}]
  %s1 = inlined_call_operand.vmem [shape: f32[2,1,1], index: 1, kind: input, shape index: {}]
  %s2 = inlined_call_operand.vmem [shape: f32[2,2,128], index: 2, kind: input, shape index: {}]
  %s3 = inlined_call_operand.hbm [shape: f32[2,2,128], index: 3, kind: output, shape index: {}]
  %s4 = sld [smem:[#allocation0]]
  $region22: #{tpu_custom_call.1} parent=0
    _
  %s6 = ssub.s32 1, %s4
  %s7 = scalar_select 0, %s6, %s4
  $region1: #{tpu_custom_call.1} parent=0
    #allocation2 [shape = 'u8[2048]{0}', space=vmem, size = 0x800, scoped, tag = 'output window, operand 0, single buffered']
    #allocation3 [shape = 's32[1]{0}', space=sflag, size = 0x4, scoped, tag = 'scoped memory for tpu_custom_call.1']
    %8 = vsyncpa [#allocation3], 0
    // Predicated region
    $region2: #{tpu_custom_call.1} parent=1 // pred_check
      _
    $region3: #{tpu_custom_call.1} parent=1 // pred_check_branch
      %10 = sbr.rel (0) target = $region5
    $region4: #{tpu_custom_call.1} parent=1 // pred_region
      _
    $region5: #{tpu_custom_call.1} parent=1 // pred_fallthru
      _
    // Predicated region
    $region6: #{tpu_custom_call.1} parent=1 // pred_check
      _
    $region7: #{tpu_custom_call.1} parent=1 // pred_check_branch
      %12 = sbr.rel (0) target = $region9
    $region8: #{tpu_custom_call.1} parent=1 // pred_region
      _
    $region9: #{tpu_custom_call.1} parent=1 // pred_fallthru
      _
    // Predicated region
    $region10: #{tpu_custom_call.1} parent=1 // pred_check
      _
    $region11: #{tpu_custom_call.1} parent=1 // pred_check_branch
      %14 = sbr.rel (0) target = $region13
    $region12: #{tpu_custom_call.1} parent=1 // pred_region
      _
    $region13: #{tpu_custom_call.1} parent=1 // pred_fallthru
      _
    %v15 = vld [vmem:[%s2] sm:$0x3]
    %v16 = vld [vmem:[%s2 + $0x2] sm:$0x3]
    %v17 = vld [vmem:[%s0] sm:$0x1]
    %v18 = vld [vmem:[%s0 + $0x1] sm:$0x1]
    %v21 = vlaneseq
    %v22 = vshrl.u32 %v21, 7
    %v23 = vsub.s32 0, %v22
    %v24 = vrot.slane %v17, %v23
    %v25 = vlaneseq
    %v26 = vshrl.u32 %v25, 7
    %v27 = vsub.s32 0, %v26
    %v28 = vrot.slane %v18, %v27
    %29 = vset.pattern.permute.xlu0 0
    %30 = vperm.xlu0 %29, %v24
    %v31 = vpop.permute.xlu0 %30
    %33 = vset.pattern.permute.xlu0 0
    %34 = vperm.xlu0 %33, %v28
    %v35 = vpop.permute.xlu0 %34
    %v37 = vmul.f32 %v15, %v31
    %v38 = vmul.f32 %v16, %v35
    %v39 = vld [vmem:[%s1] sm:$0x1]
    %v40 = vld [vmem:[%s1 + $0x1] sm:$0x1]
    %v43 = vlaneseq
    %v44 = vshrl.u32 %v43, 7
    %v45 = vsub.s32 0, %v44
    %v46 = vrot.slane %v39, %v45
    %v47 = vlaneseq
    %v48 = vshrl.u32 %v47, 7
    %v49 = vsub.s32 0, %v48
    %v50 = vrot.slane %v40, %v49
    %51 = vset.pattern.permute.xlu0 0
    %52 = vperm.xlu0 %51, %v46
    %v53 = vpop.permute.xlu0 %52
    %55 = vset.pattern.permute.xlu0 0
    %56 = vperm.xlu0 %55, %v50
    %v57 = vpop.permute.xlu0 %56
    %v59 = vadd.f32 %v37, %v53
    %v60 = vadd.f32 %v38, %v57
    %61 = vst [vmem:[#allocation2] sm:$0x3] %v59
    %62 = vst [vmem:[#allocation2 + $0x2] sm:$0x3] %v60
    // Predicated region
    $region14: #{tpu_custom_call.1} parent=1 // pred_check
      _
    $region15: #{tpu_custom_call.1} parent=1 // pred_check_branch
      %64 = sbr.rel (0) target = $region17
    $region16: #{tpu_custom_call.1} parent=1 // pred_region
      %s66 = ssub.s32 64, 64
      %67 = vsyncadd [#allocation3], %s66
      %s68 = sshll.u32 [#allocation2], 4
      %s69 = int_to_ptr.vmem [resolvable:$true] %s68
      %74 = dma.vmem_to_hbm [thread:$0]  %s69, 64, %s3, [#allocation3], 32, 32, 2
    $region17: #{tpu_custom_call.1} parent=1 // pred_fallthru
      _
    // Predicated region
    $region18: #{tpu_custom_call.1} parent=1 // pred_check
      _
    $region19: #{tpu_custom_call.1} parent=1 // pred_check_branch
      %76 = sbr.rel (0) target = $region21
    $region20: #{tpu_custom_call.1} parent=1 // pred_region
      %77 = dma.done [#allocation3], 64
    $region21: #{tpu_custom_call.1} parent=1 // pred_fallthru
      _
    %78 = vsyncpa [#allocation3], 1

</llo_original>
